<compile_context>
chip_gen: v6e
topology: v6e:2x2x1
jax: 0.10.0
libtpu: 0.0.40
codegen_flags: <defaults>
</compile_context>

<pallas_src>
import functools

import jax
import jax.numpy as jnp
from jax.experimental import pallas as pl
from jax.experimental.pallas import tpu as pltpu


def _pad8(n):
    return ((n + 7) // 8) * 8


def _round_up(n, m):
    return ((n + m - 1) // m) * m


# ---------------- streaming kernel: fused rfb chain + packed pooled sums ----------------

def _stream_kernel(x_ref,
                   r1a_ref, r1b_ref, r2a_ref, r2b_ref, r3a_ref, r3b_ref,
                   acc_ref, *, seg_offs):
    """One (batch, split, pixel-tile) step of the fused rfb1->rfb2->rfb3 chain.

    x_ref:   (C1, row_tile) channels-first pixel tile (bf16 on HBM, up-cast here).
    r*_ref:  1x1-conv weights in torch (C_out, C_in) orientation, f32.
    acc_ref: (CsumP, 128) packed lane-wide channel-sum accumulator; its index_map
             ignores the pixel-tile grid axis so it stays VMEM-resident across it.
    """
    li = pl.program_id(2)

    @pl.when(li == 0)
    def _init():
        acc_ref[...] = jnp.zeros_like(acc_ref)

    def conv1x1_relu(w_ref, v):
        return jnp.maximum(
            jnp.dot(w_ref[...], v, preferred_element_type=jnp.float32), 0.0)

    x1 = x_ref[...].astype(jnp.float32)                        # (C1, T), f32 compute
    x2 = conv1x1_relu(r1b_ref, conv1x1_relu(r1a_ref, x1))      # LightRFB stand-in, block1
    x3 = conv1x1_relu(r2b_ref, conv1x1_relu(r2a_ref, x2))      # block2
    x4 = conv1x1_relu(r3b_ref, conv1x1_relu(r3a_ref, x3))      # block3

    k = x1.shape[-1] // 128

    def lane_partial_sum(v):
        # Fold the pixel tile down to 128 lanes with vreg-aligned slice adds
        # (pure VALU; the single cross-lane reduce happens once, in the epilogue).
        out = v[:, 0:128]
        for i in range(1, k):
            out = out + v[:, i * 128:(i + 1) * 128]
        return out

    # AdaptiveAvgPool2d((1,1)) == mean over pixels; accumulate sums here, divide later.
    for off, v in zip(seg_offs, (x1, x2, x3, x4)):
        c = v.shape[0]
        acc_ref[off:off + c, :] += lane_partial_sum(v)


# ---------------- epilogue: pooled MLPs + FusionConv(+bias) + Sigmoid ----------------

def _epilogue_kernel(p_ref, wa_ref, wb_ref, fw_ref, fb_ref, o_ref, *, inv_l):
    """p_ref: (B, S, CsumP, 128) packed lane-wide channel SUMS (padded rows are 0).

    wa_ref: (CsumP, Hsum) block-diagonal first conv of the four pooled MLPs.
    wb_ref: (Hsum, 4*fc) block-diagonal second conv (concatenation along fc blocks).
    fw_ref: (4*fc, fc) fusion conv weight (transposed); fb_ref: (1, fc) bias.
    """
    m = p_ref[...].sum(axis=1).sum(axis=-1) * inv_l            # (B, CsumP) means over H*W
    h = jnp.maximum(
        jnp.dot(m, wa_ref[...], preferred_element_type=jnp.float32), 0.0)
    fw = jnp.dot(h, wb_ref[...], preferred_element_type=jnp.float32)      # (B, 4*fc)
    y = jnp.dot(fw, fw_ref[...], preferred_element_type=jnp.float32) + fb_ref[...]
    o_ref[...] = jax.nn.sigmoid(y).astype(o_ref.dtype)


# ---------------- tiling helpers ----------------

def _choose_tiling(l, c_dims, in_itemsize, *,
                   vmem_budget_bytes=20 * 1024 * 1024, max_row_tile=2048):
    """Pick (row_tile, n_splits, tiles_per_split, l_pad) from the channel counts.

    Working set per step ~= 2 * pad8(C1) * in_bytes (double-buffered input)
                           + sum(pad8(intermediate channels)) * 4B (f32 activations).
    Tile is capped at 2048 rows (>=85% of HBM roofline already) and at the VMEM
    budget so it survives v7x's 64 MiB per-TC VMEM with realistic C1.
    """
    c1, m1, c2, m2, c3, m3, c4 = c_dims
    inter_rows = sum(_pad8(c) for c in (c1, m1, c2, m2, c3, m3, c4))
    bytes_per_row = 2 * _pad8(c1) * in_itemsize + inter_rows * 4
    cap = max(128, (vmem_budget_bytes // bytes_per_row) // 128 * 128)
    l_128 = _round_up(l, 128)
    row_tile = max(128, min(max_row_tile, cap, l_128))
    # Split the pixel axis 2-way (extra "parallel" grid axis -> v7x's 2nd TC) only
    # when L is big enough that the extra padding is negligible.
    n_splits = 2 if l_128 >= 2 * row_tile else 1
    l_pad = _round_up(l, n_splits * row_tile)
    tiles_per_split = l_pad // (n_splits * row_tile)
    return row_tile, n_splits, tiles_per_split, l_pad


# ---------------- forward (glue in plain JAX, compute in Pallas) ----------------

def frame_attention_forward(params, x, origin_shape, *, stream_dtype=jnp.bfloat16):
    # x: NCHW (B*T, C, H, W), exactly like the torch module input.
    b = int(origin_shape[0])
    _, _, h, w = x.shape
    l = h * w

    # (B, T*C, H*W) channels-first; cast the HBM-streamed activations to bf16
    # (halves the dominant HBM read); all in-kernel math stays f32.
    ff1 = x.reshape(b, -1, l).astype(stream_dtype)
    c1 = ff1.shape[1]

    rfb_ws = (params["b1_rfb_w1"], params["b1_rfb_w2"],
              params["b2_rfb_w1"], params["b2_rfb_w2"],
              params["b3_rfb_w1"], params["b3_rfb_w2"])
    m1, c2 = rfb_ws[0].shape[0], rfb_ws[1].shape[0]
    m2, c3 = rfb_ws[2].shape[0], rfb_ws[3].shape[0]
    m3, c4 = rfb_ws[4].shape[0], rfb_ws[5].shape[0]
    fc = params["fusion_w"].shape[0]

    row_tile, n_splits, tiles_per_split, l_pad = _choose_tiling(
        l, (c1, m1, c2, m2, c3, m3, c4), jnp.dtype(stream_dtype).itemsize)
    if l_pad != l:
        # Zero columns are inert: bias-free conv + ReLU maps 0 -> 0, and the mean
        # divides by the true pixel count l.
        ff1 = jnp.pad(ff1, ((0, 0), (0, 0), (0, l_pad - l)))

    # Packed pooled-sum layout: 8-aligned channel segments for x1/x2/x3/x4.
    seg_offs, off = [], 0
    for c in (c1, c2, c3, c4):
        seg_offs.append(off)
        off += _pad8(c)
    csum_p = off

    # ---- streaming kernel: single pass over ff1, everything else stays in VMEM ----
    acc = pl.pallas_call(
        functools.partial(_stream_kernel, seg_offs=tuple(seg_offs)),
        out_shape=jax.ShapeDtypeStruct((b, n_splits, csum_p, 128), jnp.float32),
        grid=(b, n_splits, tiles_per_split),
        in_specs=[pl.BlockSpec(
                      (None, c1, row_tile),
                      lambda bi, si, li: (bi, 0, si * tiles_per_split + li))]
                 + [pl.BlockSpec(wt.shape, lambda bi, si, li: (0, 0)) for wt in rfb_ws],
        out_specs=pl.BlockSpec((None, None, csum_p, 128),
                               lambda bi, si, li: (bi, si, 0, 0)),
        compiler_params=pltpu.CompilerParams(
            dimension_semantics=("parallel", "parallel", "arbitrary"),
            vmem_limit_bytes=32 * 1024 * 1024),
    )(ff1, *rfb_ws)

    # ---- epilogue: 4 pooled MLPs (block-diagonal) + fusion conv + sigmoid, 6 operands ----
    mlp_w1 = (params["b1_mlp_w1"], params["b2_mlp_w1"], params["b3_mlp_w1"], params["b4_w1"])
    mlp_w2 = (params["b1_mlp_w2"], params["b2_mlp_w2"], params["b3_mlp_w2"], params["b4_w2"])
    cs = (c1, c2, c3, c4)
    hs = tuple(wi.shape[0] for wi in mlp_w1)
    hsum = sum(hs)
    hoffs = (0, hs[0], hs[0] + hs[1], hs[0] + hs[1] + hs[2])

    wa_bd = jnp.zeros((csum_p, hsum), jnp.float32)
    wb_bd = jnp.zeros((hsum, 4 * fc), jnp.float32)
    for i in range(4):
        wa_bd = wa_bd.at[seg_offs[i]:seg_offs[i] + cs[i],
                         hoffs[i]:hoffs[i] + hs[i]].set(mlp_w1[i].T)
        wb_bd = wb_bd.at[hoffs[i]:hoffs[i] + hs[i],
                         i * fc:(i + 1) * fc].set(mlp_w2[i].T)

    out = pl.pallas_call(
        functools.partial(_epilogue_kernel, inv_l=1.0 / float(l)),
        out_shape=jax.ShapeDtypeStruct((b, fc), jnp.float32),
    )(acc, wa_bd, wb_bd, params["fusion_w"].T, params["fusion_b"])

    # torch: frame_weight_fusion.view(-1, 1, 1, 1)
    return out.reshape(-1, 1, 1, 1)


# ---------------- parameters (deterministic, synthetic, torch (C_out, C_in) orientation) ----------------

def _w(key, cout, cin):
    return (1.0 / jnp.sqrt(jnp.float32(cin))) * jax.random.normal(
        key, (cout, cin), dtype=jnp.float32)


def init_params(channels_in, frame_channels, ratio, key):
    ks = jax.random.split(key, 16)
    fc = frame_channels
    c1 = channels_in;  o1 = c1 // ratio;  m1 = (c1 + o1) // 2
    c2 = o1;           o2 = c2 // ratio;  m2 = (c2 + o2) // 2
    c3 = o2;           o3 = fc;           m3 = (c3 + o3) // 2
    return {
        "b1_mlp_w1": _w(ks[0], o1, c1), "b1_mlp_w2": _w(ks[1], fc, o1),
        "b1_rfb_w1": _w(ks[2], m1, c1), "b1_rfb_w2": _w(ks[3], o1, m1),
        "b2_mlp_w1": _w(ks[4], o2, c2), "b2_mlp_w2": _w(ks[5], fc, o2),
        "b2_rfb_w1": _w(ks[6], m2, c2), "b2_rfb_w2": _w(ks[7], o2, m2),
        "b3_mlp_w1": _w(ks[8], o3, c3), "b3_mlp_w2": _w(ks[9], fc, o3),
        "b3_rfb_w1": _w(ks[10], m3, c3), "b3_rfb_w2": _w(ks[11], o3, m3),
        "b4_w1": _w(ks[12], fc // ratio, fc), "b4_w2": _w(ks[13], fc, fc // ratio),
        "fusion_w": _w(ks[14], fc, 4 * fc),
        "fusion_b": 0.01 * jax.random.normal(ks[15], (1, fc), dtype=jnp.float32),
    }


# ---------------- plain-JAX reference (same math, no Pallas, f32 HIGHEST) ----------------

def _reference_forward(params, x, origin_shape):
    hp = jax.lax.Precision.HIGHEST
    b = int(origin_shape[0])
    _, _, h, w = x.shape
    ff1 = x.reshape(b, -1, h * w)

    def rfb(f, wa, wb):
        t = jnp.maximum(jnp.einsum("oc,bcl->bol", wa, f, precision=hp), 0.0)
        return jnp.maximum(jnp.einsum("oc,bcl->bol", wb, t, precision=hp), 0.0)

    def pooled_mlp(f, wa, wb):
        m = jnp.mean(f, axis=-1)
        hh = jnp.maximum(jnp.dot(m, wa.T, precision=hp), 0.0)
        return jnp.dot(hh, wb.T, precision=hp)

    ff2 = rfb(ff1, params["b1_rfb_w1"], params["b1_rfb_w2"])
    ff3 = rfb(ff2, params["b2_rfb_w1"], params["b2_rfb_w2"])
    ff4 = rfb(ff3, params["b3_rfb_w1"], params["b3_rfb_w2"])
    fw1 = pooled_mlp(ff1, params["b1_mlp_w1"], params["b1_mlp_w2"])
    fw2 = pooled_mlp(ff2, params["b2_mlp_w1"], params["b2_mlp_w2"])
    fw3 = pooled_mlp(ff3, params["b3_mlp_w1"], params["b3_mlp_w2"])
    fw4 = pooled_mlp(ff4, params["b4_w1"], params["b4_w2"])
    cat = jnp.concatenate([fw1, fw2, fw3, fw4], axis=1)
    y = jax.nn.sigmoid(jnp.dot(cat, params["fusion_w"].T, precision=hp)
                       + params["fusion_b"])
    return y.reshape(-1, 1, 1, 1)


if __name__ == "__main__":
    B, T, C, H, W = 2, 2, 8, 16, 16
    channels_in = T * C        # 16 (FrameAttention channels_in must equal T*C after the view)
    frame_channels = 8
    ratio = 2

    key = jax.random.PRNGKey(0)
    kx, kp = jax.random.split(key)
    x = jax.random.normal(kx, (B * T, C, H, W), dtype=jnp.float32)   # NCHW, as in PyTorch
    params = init_params(channels_in, frame_channels, ratio, kp)

    out = frame_attention_forward(params, x, (B, T, C, H, W))
    out = jax.block_until_ready(out)

    assert out.shape == (B * frame_channels, 1, 1, 1), out.shape
    assert bool(jnp.all((out > 0.0) & (out < 1.0)))                  # sigmoid output range

    ref = _reference_forward(params, x, (B, T, C, H, W))
    max_err = float(jnp.max(jnp.abs(out - ref)))
    assert bool(jnp.allclose(out, ref, rtol=2e-2, atol=2e-2)), f"max_err={max_err}"

    print("KERNEL_OK")
</pallas_src>

<mosaic_0001>
module attributes {stable_mosaic.version = 11 : i64} {
  func.func @_stream_kernel(%arg0: i32, %arg1: i32, %arg2: i32, %arg3: memref<1x16x256xbf16, #tpu.memory_space<vmem>>, %arg4: memref<12x16xf32, #tpu.memory_space<vmem>>, %arg5: memref<8x12xf32, #tpu.memory_space<vmem>>, %arg6: memref<6x8xf32, #tpu.memory_space<vmem>>, %arg7: memref<4x6xf32, #tpu.memory_space<vmem>>, %arg8: memref<6x4xf32, #tpu.memory_space<vmem>>, %arg9: memref<8x6xf32, #tpu.memory_space<vmem>>, %arg10: memref<1x1x40x128xf32, #tpu.memory_space<vmem>>) attributes {dimension_semantics = [#tpu.dimension_semantics<parallel>, #tpu.dimension_semantics<parallel>, #tpu.dimension_semantics<arbitrary>], iteration_bounds = array<i64: 2, 1, 1>, scalar_prefetch = 0 : i64, scratch_operands = 0 : i64, tpu.core_type = #tpu.core_type<tc>, window_params = [{transform_indices = @transform_0, window_bounds = array<i64: 1, 16, 256>}, {pipeline_mode = #tpu.pipeline_mode<synchronous>, transform_indices = @transform_1, window_bounds = array<i64: 12, 16>}, {pipeline_mode = #tpu.pipeline_mode<synchronous>, transform_indices = @transform_2, window_bounds = array<i64: 8, 12>}, {pipeline_mode = #tpu.pipeline_mode<synchronous>, transform_indices = @transform_3, window_bounds = array<i64: 6, 8>}, {pipeline_mode = #tpu.pipeline_mode<synchronous>, transform_indices = @transform_4, window_bounds = array<i64: 4, 6>}, {pipeline_mode = #tpu.pipeline_mode<synchronous>, transform_indices = @transform_5, window_bounds = array<i64: 6, 4>}, {pipeline_mode = #tpu.pipeline_mode<synchronous>, transform_indices = @transform_6, window_bounds = array<i64: 8, 6>}, {transform_indices = @transform_7, window_bounds = array<i64: 1, 1, 40, 128>}]} {
    %c0_i32 = arith.constant 0 : i32
    %0 = arith.cmpi eq, %arg2, %c0_i32 : i32
    %1 = arith.extui %0 : i1 to i32
    %c0_i32_0 = arith.constant 0 : i32
    %2 = arith.cmpi ne, %1, %c0_i32_0 : i32
    scf.if %2 {
      %cst_55 = arith.constant 0.000000e+00 : f32
      %66 = vector.broadcast %cst_55 : f32 to vector<40x128xf32>
      %c0_56 = arith.constant 0 : index
      %c0_57 = arith.constant 0 : index
      %c0_58 = arith.constant 0 : index
      %c0_59 = arith.constant 0 : index
      %67 = vector.load %arg10[%c0_56, %c0_57, %c0_58, %c0_59] : memref<1x1x40x128xf32, #tpu.memory_space<vmem>>, vector<1x1x40x128xf32>
      %68 = vector.shape_cast %67 : vector<1x1x40x128xf32> to vector<40x128xf32>
      %69 = vector.shape_cast %66 : vector<40x128xf32> to vector<1x1x40x128xf32>
      tpu.vector_store %arg10[%c0_56, %c0_57, %c0_58, %c0_59], %69 {strides = array<i32>} : memref<1x1x40x128xf32, #tpu.memory_space<vmem>>, vector<1x1x40x128xf32>,
    } else {
    }
    %c0 = arith.constant 0 : index
    %c0_1 = arith.constant 0 : index
    %c0_2 = arith.constant 0 : index
    %3 = vector.load %arg3[%c0, %c0_1, %c0_2] : memref<1x16x256xbf16, #tpu.memory_space<vmem>>, vector<1x16x256xbf16>
    %4 = vector.shape_cast %3 : vector<1x16x256xbf16> to vector<16x256xbf16>
    %5 = arith.extf %4 : vector<16x256xbf16> to vector<16x256xf32>
    %c0_3 = arith.constant 0 : index
    %c0_4 = arith.constant 0 : index
    %6 = vector.load %arg4[%c0_3, %c0_4] : memref<12x16xf32, #tpu.memory_space<vmem>>, vector<12x16xf32>
    %cst = arith.constant dense<0.000000e+00> : vector<12x256xf32>
    %7 = tpu.matmul %6, %5, %cst {dimension_numbers = #tpu.dot_dimension_numbers<[1], [0], [0], [1], [0, 0, 1, 1], [], []>} : vector<12x16xf32>, vector<16x256xf32>, vector<12x256xf32> -> vector<12x256xf32>
    %cst_5 = arith.constant 0.000000e+00 : f32
    %8 = vector.broadcast %cst_5 : f32 to vector<12x256xf32>
    %9 = arith.maximumf %7, %8 : vector<12x256xf32>
    %c0_6 = arith.constant 0 : index
    %c0_7 = arith.constant 0 : index
    %10 = vector.load %arg5[%c0_6, %c0_7] : memref<8x12xf32, #tpu.memory_space<vmem>>, vector<8x12xf32>
    %cst_8 = arith.constant dense<0.000000e+00> : vector<8x256xf32>
    %11 = tpu.matmul %10, %9, %cst_8 {dimension_numbers = #tpu.dot_dimension_numbers<[1], [0], [0], [1], [0, 0, 1, 1], [], []>} : vector<8x12xf32>, vector<12x256xf32>, vector<8x256xf32> -> vector<8x256xf32>
    %cst_9 = arith.constant 0.000000e+00 : f32
    %12 = vector.broadcast %cst_9 : f32 to vector<8x256xf32>
    %13 = arith.maximumf %11, %12 : vector<8x256xf32>
    %c0_10 = arith.constant 0 : index
    %c0_11 = arith.constant 0 : index
    %14 = vector.load %arg6[%c0_10, %c0_11] : memref<6x8xf32, #tpu.memory_space<vmem>>, vector<6x8xf32>
    %cst_12 = arith.constant dense<0.000000e+00> : vector<6x256xf32>
    %15 = tpu.matmul %14, %13, %cst_12 {dimension_numbers = #tpu.dot_dimension_numbers<[1], [0], [0], [1], [0, 0, 1, 1], [], []>} : vector<6x8xf32>, vector<8x256xf32>, vector<6x256xf32> -> vector<6x256xf32>
    %cst_13 = arith.constant 0.000000e+00 : f32
    %16 = vector.broadcast %cst_13 : f32 to vector<6x256xf32>
    %17 = arith.maximumf %15, %16 : vector<6x256xf32>
    %c0_14 = arith.constant 0 : index
    %c0_15 = arith.constant 0 : index
    %18 = vector.load %arg7[%c0_14, %c0_15] : memref<4x6xf32, #tpu.memory_space<vmem>>, vector<4x6xf32>
    %cst_16 = arith.constant dense<0.000000e+00> : vector<4x256xf32>
    %19 = tpu.matmul %18, %17, %cst_16 {dimension_numbers = #tpu.dot_dimension_numbers<[1], [0], [0], [1], [0, 0, 1, 1], [], []>} : vector<4x6xf32>, vector<6x256xf32>, vector<4x256xf32> -> vector<4x256xf32>
    %cst_17 = arith.constant 0.000000e+00 : f32
    %20 = vector.broadcast %cst_17 : f32 to vector<4x256xf32>
    %21 = arith.maximumf %19, %20 : vector<4x256xf32>
    %c0_18 = arith.constant 0 : index
    %c0_19 = arith.constant 0 : index
    %22 = vector.load %arg8[%c0_18, %c0_19] : memref<6x4xf32, #tpu.memory_space<vmem>>, vector<6x4xf32>
    %cst_20 = arith.constant dense<0.000000e+00> : vector<6x256xf32>
    %23 = tpu.matmul %22, %21, %cst_20 {dimension_numbers = #tpu.dot_dimension_numbers<[1], [0], [0], [1], [0, 0, 1, 1], [], []>} : vector<6x4xf32>, vector<4x256xf32>, vector<6x256xf32> -> vector<6x256xf32>
    %cst_21 = arith.constant 0.000000e+00 : f32
    %24 = vector.broadcast %cst_21 : f32 to vector<6x256xf32>
    %25 = arith.maximumf %23, %24 : vector<6x256xf32>
    %c0_22 = arith.constant 0 : index
    %c0_23 = arith.constant 0 : index
    %26 = vector.load %arg9[%c0_22, %c0_23] : memref<8x6xf32, #tpu.memory_space<vmem>>, vector<8x6xf32>
    %cst_24 = arith.constant dense<0.000000e+00> : vector<8x256xf32>
    %27 = tpu.matmul %26, %25, %cst_24 {dimension_numbers = #tpu.dot_dimension_numbers<[1], [0], [0], [1], [0, 0, 1, 1], [], []>} : vector<8x6xf32>, vector<6x256xf32>, vector<8x256xf32> -> vector<8x256xf32>
    %cst_25 = arith.constant 0.000000e+00 : f32
    %28 = vector.broadcast %cst_25 : f32 to vector<8x256xf32>
    %29 = arith.maximumf %27, %28 : vector<8x256xf32>
    %c0_26 = arith.constant 0 : index
    %c0_27 = arith.constant 0 : index
    %c0_28 = arith.constant 0 : index
    %c0_29 = arith.constant 0 : index
    %30 = vector.load %arg10[%c0_26, %c0_27, %c0_28, %c0_29] : memref<1x1x40x128xf32, #tpu.memory_space<vmem>>, vector<1x1x16x128xf32>
    %31 = vector.shape_cast %30 : vector<1x1x16x128xf32> to vector<16x128xf32>
    %32 = vector.extract_strided_slice %5 {offsets = [0, 0], sizes = [16, 128], strides = [1, 1]} : vector<16x256xf32> to vector<16x128xf32>
    %33 = vector.extract_strided_slice %5 {offsets = [0, 128], sizes = [16, 128], strides = [1, 1]} : vector<16x256xf32> to vector<16x128xf32>
    %34 = arith.addf %32, %33 : vector<16x128xf32>
    %35 = arith.addf %31, %34 : vector<16x128xf32>
    %c0_30 = arith.constant 0 : index
    %c0_31 = arith.constant 0 : index
    %c0_32 = arith.constant 0 : index
    %c0_33 = arith.constant 0 : index
    %36 = vector.load %arg10[%c0_30, %c0_31, %c0_32, %c0_33] : memref<1x1x40x128xf32, #tpu.memory_space<vmem>>, vector<1x1x16x128xf32>
    %37 = vector.shape_cast %36 : vector<1x1x16x128xf32> to vector<16x128xf32>
    %38 = vector.shape_cast %35 : vector<16x128xf32> to vector<1x1x16x128xf32>
    tpu.vector_store %arg10[%c0_30, %c0_31, %c0_32, %c0_33], %38 {strides = array<i32>} : memref<1x1x40x128xf32, #tpu.memory_space<vmem>>, vector<1x1x16x128xf32>,
    %c0_34 = arith.constant 0 : index
    %c0_35 = arith.constant 0 : index
    %c16 = arith.constant 16 : index
    %c0_36 = arith.constant 0 : index
    %39 = vector.load %arg10[%c0_34, %c0_35, %c16, %c0_36] : memref<1x1x40x128xf32, #tpu.memory_space<vmem>>, vector<1x1x8x128xf32>
    %40 = vector.shape_cast %39 : vector<1x1x8x128xf32> to vector<8x128xf32>
    %41 = vector.extract_strided_slice %13 {offsets = [0, 0], sizes = [8, 128], strides = [1, 1]} : vector<8x256xf32> to vector<8x128xf32>
    %42 = vector.extract_strided_slice %13 {offsets = [0, 128], sizes = [8, 128], strides = [1, 1]} : vector<8x256xf32> to vector<8x128xf32>
    %43 = arith.addf %41, %42 : vector<8x128xf32>
    %44 = arith.addf %40, %43 : vector<8x128xf32>
    %c0_37 = arith.constant 0 : index
    %c0_38 = arith.constant 0 : index
    %c16_39 = arith.constant 16 : index
    %c0_40 = arith.constant 0 : index
    %45 = vector.load %arg10[%c0_37, %c0_38, %c16_39, %c0_40] : memref<1x1x40x128xf32, #tpu.memory_space<vmem>>, vector<1x1x8x128xf32>
    %46 = vector.shape_cast %45 : vector<1x1x8x128xf32> to vector<8x128xf32>
    %47 = vector.shape_cast %44 : vector<8x128xf32> to vector<1x1x8x128xf32>
    tpu.vector_store %arg10[%c0_37, %c0_38, %c16_39, %c0_40], %47 {strides = array<i32>} : memref<1x1x40x128xf32, #tpu.memory_space<vmem>>, vector<1x1x8x128xf32>,
    %c0_41 = arith.constant 0 : index
    %c0_42 = arith.constant 0 : index
    %c24 = arith.constant 24 : index
    %c0_43 = arith.constant 0 : index
    %48 = vector.load %arg10[%c0_41, %c0_42, %c24, %c0_43] : memref<1x1x40x128xf32, #tpu.memory_space<vmem>>, vector<1x1x4x128xf32>
    %49 = vector.shape_cast %48 : vector<1x1x4x128xf32> to vector<4x128xf32>
    %50 = vector.extract_strided_slice %21 {offsets = [0, 0], sizes = [4, 128], strides = [1, 1]} : vector<4x256xf32> to vector<4x128xf32>
    %51 = vector.extract_strided_slice %21 {offsets = [0, 128], sizes = [4, 128], strides = [1, 1]} : vector<4x256xf32> to vector<4x128xf32>
    %52 = arith.addf %50, %51 : vector<4x128xf32>
    %53 = arith.addf %49, %52 : vector<4x128xf32>
    %c0_44 = arith.constant 0 : index
    %c0_45 = arith.constant 0 : index
    %c24_46 = arith.constant 24 : index
    %c0_47 = arith.constant 0 : index
    %54 = vector.load %arg10[%c0_44, %c0_45, %c24_46, %c0_47] : memref<1x1x40x128xf32, #tpu.memory_space<vmem>>, vector<1x1x4x128xf32>
    %55 = vector.shape_cast %54 : vector<1x1x4x128xf32> to vector<4x128xf32>
    %56 = vector.shape_cast %53 : vector<4x128xf32> to vector<1x1x4x128xf32>
    tpu.vector_store %arg10[%c0_44, %c0_45, %c24_46, %c0_47], %56 {strides = array<i32>} : memref<1x1x40x128xf32, #tpu.memory_space<vmem>>, vector<1x1x4x128xf32>,
    %c0_48 = arith.constant 0 : index
    %c0_49 = arith.constant 0 : index
    %c32 = arith.constant 32 : index
    %c0_50 = arith.constant 0 : index
    %57 = vector.load %arg10[%c0_48, %c0_49, %c32, %c0_50] : memref<1x1x40x128xf32, #tpu.memory_space<vmem>>, vector<1x1x8x128xf32>
    %58 = vector.shape_cast %57 : vector<1x1x8x128xf32> to vector<8x128xf32>
    %59 = vector.extract_strided_slice %29 {offsets = [0, 0], sizes = [8, 128], strides = [1, 1]} : vector<8x256xf32> to vector<8x128xf32>
    %60 = vector.extract_strided_slice %29 {offsets = [0, 128], sizes = [8, 128], strides = [1, 1]} : vector<8x256xf32> to vector<8x128xf32>
    %61 = arith.addf %59, %60 : vector<8x128xf32>
    %62 = arith.addf %58, %61 : vector<8x128xf32>
    %c0_51 = arith.constant 0 : index
    %c0_52 = arith.constant 0 : index
    %c32_53 = arith.constant 32 : index
    %c0_54 = arith.constant 0 : index
    %63 = vector.load %arg10[%c0_51, %c0_52, %c32_53, %c0_54] : memref<1x1x40x128xf32, #tpu.memory_space<vmem>>, vector<1x1x8x128xf32>
    %64 = vector.shape_cast %63 : vector<1x1x8x128xf32> to vector<8x128xf32>
    %65 = vector.shape_cast %62 : vector<8x128xf32> to vector<1x1x8x128xf32>
    tpu.vector_store %arg10[%c0_51, %c0_52, %c32_53, %c0_54], %65 {strides = array<i32>} : memref<1x1x40x128xf32, #tpu.memory_space<vmem>>, vector<1x1x8x128xf32>,
    return
  }
  func.func @transform_0(%arg0: i32, %arg1: i32, %arg2: i32) -> (i32, i32, i32) {
    %c1_i32 = arith.constant 1 : i32
    %0 = arith.muli %arg1, %c1_i32 : i32
    %1 = arith.addi %0, %arg2 : i32
    %c0_i32 = arith.constant 0 : i32
    %c0_i32_0 = arith.constant 0 : i32
    return %arg0, %c0_i32, %1 : i32, i32, i32
  }
  func.func @transform_1(%arg0: i32, %arg1: i32, %arg2: i32) -> (i32, i32) {
    %c0_i32 = arith.constant 0 : i32
    %c0_i32_0 = arith.constant 0 : i32
    %c0_i32_1 = arith.constant 0 : i32
    return %c0_i32, %c0_i32_0 : i32, i32
  }
  func.func @transform_2(%arg0: i32, %arg1: i32, %arg2: i32) -> (i32, i32) {
    %c0_i32 = arith.constant 0 : i32
    %c0_i32_0 = arith.constant 0 : i32
    %c0_i32_1 = arith.constant 0 : i32
    return %c0_i32, %c0_i32_0 : i32, i32
  }
  func.func @transform_3(%arg0: i32, %arg1: i32, %arg2: i32) -> (i32, i32) {
    %c0_i32 = arith.constant 0 : i32
    %c0_i32_0 = arith.constant 0 : i32
    %c0_i32_1 = arith.constant 0 : i32
    return %c0_i32, %c0_i32_0 : i32, i32
  }
  func.func @transform_4(%arg0: i32, %arg1: i32, %arg2: i32) -> (i32, i32) {
    %c0_i32 = arith.constant 0 : i32
    %c0_i32_0 = arith.constant 0 : i32
    %c0_i32_1 = arith.constant 0 : i32
    return %c0_i32, %c0_i32_0 : i32, i32
  }
  func.func @transform_5(%arg0: i32, %arg1: i32, %arg2: i32) -> (i32, i32) {
    %c0_i32 = arith.constant 0 : i32
    %c0_i32_0 = arith.constant 0 : i32
    %c0_i32_1 = arith.constant 0 : i32
    return %c0_i32, %c0_i32_0 : i32, i32
  }
  func.func @transform_6(%arg0: i32, %arg1: i32, %arg2: i32) -> (i32, i32) {
    %c0_i32 = arith.constant 0 : i32
    %c0_i32_0 = arith.constant 0 : i32
    %c0_i32_1 = arith.constant 0 : i32
    return %c0_i32, %c0_i32_0 : i32, i32
  }
  func.func @transform_7(%arg0: i32, %arg1: i32, %arg2: i32) -> (i32, i32, i32, i32) {
    %c0_i32 = arith.constant 0 : i32
    %c0_i32_0 = arith.constant 0 : i32
    %c0_i32_1 = arith.constant 0 : i32
    return %arg0, %arg1, %c0_i32, %c0_i32_0 : i32, i32, i32, i32
  }
}

</mosaic_0001>

<llo_original>
// kernel: tpu_custom_call.1
$region0: #{tpu_custom_call.1}
  #allocation0 [shape = 'u32[]', space=smem, size = 0x4, offset = 0x4, fixed_abs, tag = 'smem constant byte address 0x4 - core index']
  #allocation1 [shape = 'u32[144,128]{1,0:T(1,128)}', space=vmem, size = 0x12000, scoped, tag = 'internal scratch']
  %s0 = inlined_call_operand.hbm [shape: bf16[2,16,256], index: 0, kind: input, shape index: {}]
  %s1 = inlined_call_operand.hbm [shape: f32[12,16], index: 1, kind: input, shape index: {}]
  %s2 = inlined_call_operand.vmem [shape: f32[8,12], index: 2, kind: input, shape index: {}]
  %s3 = inlined_call_operand.vmem [shape: f32[6,8], index: 3, kind: input, shape index: {}]
  %s4 = inlined_call_operand.hbm [shape: f32[4,6], index: 4, kind: input, shape index: {}]
  %s5 = inlined_call_operand.vmem [shape: f32[6,4], index: 5, kind: input, shape index: {}]
  %s6 = inlined_call_operand.hbm [shape: f32[8,6], index: 6, kind: input, shape index: {}]
  %s7 = inlined_call_operand.hbm [shape: f32[2,1,40,128], index: 7, kind: output, shape index: {}]
  %s8 = sld [smem:[#allocation0]]
  $region81: #{tpu_custom_call.1} parent=0
    _
  %s10 = ssub.s32 1, %s8
  %s11 = scalar_select 0, %s10, %s8
  $region1: #{tpu_custom_call.1} parent=0
    #allocation2 [shape = 'u8[16384]{0}', space=vmem, size = 0x4000, scoped, tag = 'input window, operand 0']
    #allocation3 [shape = 's32[2]{0}', space=sflag, size = 0x8, scoped, tag = 'scoped memory for tpu_custom_call.1']
    #allocation4 [shape = 's32[2]{0}', space=sflag, size = 0x8, scoped, tag = 'scoped memory for tpu_custom_call.1']
    #allocation5 [shape = 'u8[8192]{0}', space=vmem, size = 0x2000, scoped, tag = 'input window, operand 1, single buffered']
    #allocation6 [shape = 's32[1]{0}', space=sflag, size = 0x4, scoped, tag = 'scoped memory for tpu_custom_call.1']
    #allocation7 [shape = 'u8[2048]{0}', space=vmem, size = 0x800, scoped, tag = 'input window, operand 4, single buffered']
    #allocation8 [shape = 'u8[4096]{0}', space=vmem, size = 0x1000, scoped, tag = 'input window, operand 6, single buffered']
    #allocation9 [shape = 's32[1]{0}', space=sflag, size = 0x4, scoped, tag = 'scoped memory for tpu_custom_call.1']
    #allocation10 [shape = 'u8[40960]{0}', space=vmem, size = 0xa000, scoped, tag = 'output window, operand 0']
    %12 = vsyncpa [#allocation3], 0
    %s13 = scalar_lea.sflag [#allocation3], 1
    %14 = vsyncpa %s13, 0
    %15 = vsyncpa [#allocation6], 0
    %16 = vsyncpa [#allocation9], 0
    %17 = vsyncpa [#allocation4], 0
    %s18 = scalar_lea.sflag [#allocation4], 1
    %19 = vsyncpa %s18, 0
    loop: start=0, step=1, limit=4
    $region2: #{tpu_custom_call.1} parent=1 // loop_pre_header
      _
    $region3: #{tpu_custom_call.1} parent=1 // loop_header
      %s21 = sphi 0, %s25
      %p22 = scmp.ge.s32.totalorder %s21, 4
      %s28 = sphi 0, %s47
      %s29 = sphi 0, %s43
      %s30 = sphi 0, %s39
      %s31 = sphi 0, %s28
      %s32 = sphi 0, %s29
      %s33 = sphi 0, %s30
      %s34 = sphi 0, %s31
      %s35 = sphi 0, %s32
      %s36 = sphi 0, %s33
      %s54 = sphi 0, %s56
      %s57 = sphi 0, %s54
      %s58 = sphi 0, %s57
      %s74 = sphi 0, %s58
      %s78 = sphi 0, %s78
      %s80 = sphi 0, %s78
      %s81 = sphi 0, %s80
      %s95 = sphi 0, %s81
      %s99 = sphi 0, %s99
      %s101 = sphi 0, %s99
      %s102 = sphi 0, %s101
      %s116 = sphi 0, %s102
      %s120 = sphi 0, %s120
      %s122 = sphi 0, %s120
      %s123 = sphi 0, %s122
      %s137 = sphi 0, %s123
      %s141 = sphi 0, %s141
      %s143 = sphi 0, %s141
      %s144 = sphi 0, %s143
      %s158 = sphi 0, %s144
      %s162 = sphi 0, %s162
      %s164 = sphi 0, %s162
      %s165 = sphi 0, %s164
      %s179 = sphi 0, %s165
      %s183 = sphi 0, %s183
      %s185 = sphi 0, %s183
      %s186 = sphi 0, %s185
      %s200 = sphi 0, %s186
      %s208 = sphi 0, %s210
      %s211 = sphi 0, %s208
      %s212 = sphi 0, %s211
      %s228 = sphi 0, %s212
    $region4: #{tpu_custom_call.1} parent=1 // loop_header_branch
      %24 = sbr.rel (%p22) target = $region8
    $region5: #{tpu_custom_call.1} parent=1 // loop_body
      %s26 = ssub.s32 %s21, 1
      %s27 = ssub.s32 %s21, 2
      %s37 = sadd.s32 1, %s30
      %p38 = scmp.ge.s32.totalorder %s37, 1
      %s39 = scalar_select %p38, 0, %s37
      %s40 = sadd.s32 1, %s29
      %s41 = scalar_select %p38, %s40, %s29
      %p42 = scmp.ge.s32.totalorder %s41, 1
      %s43 = scalar_select %p42, 0, %s41
      %s44 = sadd.s32 1, %s28
      %s45 = scalar_select %p42, %s44, %s28
      %p46 = scmp.ge.s32.totalorder %s45, 2
      %s47 = scalar_select %p46, 0, %s45
      %s48 = sadd.s32 %s29, %s30
      %s49 = sadd.s32 %s43, %s39
      %s50 = ssub.s32 %s28, %s47
      %s51 = ssub.s32 %s48, %s49
      %s52 = sor.u32 %s50, %s51
      %p53 = scmp.eq.s32.totalorder %s52, 0
      %s55 = sadd.s32 %s54, 1
      %s56 = scalar_select %p53, %s54, %s55
      %p59 = pneg %p53
      %p60 = scmp.eq.s32.totalorder %s21, 1
      %p61 = por %p59, %p60
      %p62 = scmp.ne.s32.totalorder %s54, %s57
      %p63 = scmp.eq.s32.totalorder %s21, 0
      %p64 = por %p62, %p63
      %p65 = scmp.ne.s32.totalorder %s54, %s57
      %p66 = scmp.eq.s32.totalorder %s26, 1
      %p67 = por %p65, %p66
      %p68 = scmp.ne.s32.totalorder %s57, %s58
      %p69 = scmp.eq.s32.totalorder %s26, 0
      %p70 = por %p68, %p69
      %p71 = scmp.ne.s32.totalorder %s57, %s58
      %p72 = scmp.eq.s32.totalorder %s27, 1
      %p73 = por %p71, %p72
      %p75 = scmp.ne.s32.totalorder %s58, %s74
      %p76 = scmp.eq.s32.totalorder %s27, 0
      %p77 = por %p75, %p76
      %s79 = sadd.s32 %s78, 1
      %p82 = scmp.eq.s32.totalorder %s21, 1
      %p83 = scmp.ne.s32.totalorder %s78, %s80
      %p84 = scmp.eq.s32.totalorder %s21, 0
      %p85 = por %p83, %p84
      %p86 = scmp.ne.s32.totalorder %s78, %s80
      %p87 = scmp.eq.s32.totalorder %s26, 1
      %p88 = por %p86, %p87
      %p89 = scmp.ne.s32.totalorder %s80, %s81
      %p90 = scmp.eq.s32.totalorder %s26, 0
      %p91 = por %p89, %p90
      %p92 = scmp.ne.s32.totalorder %s80, %s81
      %p93 = scmp.eq.s32.totalorder %s27, 1
      %p94 = por %p92, %p93
      %p96 = scmp.ne.s32.totalorder %s81, %s95
      %p97 = scmp.eq.s32.totalorder %s27, 0
      %p98 = por %p96, %p97
      %s100 = sadd.s32 %s99, 1
      %p103 = scmp.eq.s32.totalorder %s21, 1
      %p104 = scmp.ne.s32.totalorder %s99, %s101
      %p105 = scmp.eq.s32.totalorder %s21, 0
      %p106 = por %p104, %p105
      %p107 = scmp.ne.s32.totalorder %s99, %s101
      %p108 = scmp.eq.s32.totalorder %s26, 1
      %p109 = por %p107, %p108
      %p110 = scmp.ne.s32.totalorder %s101, %s102
      %p111 = scmp.eq.s32.totalorder %s26, 0
      %p112 = por %p110, %p111
      %p113 = scmp.ne.s32.totalorder %s101, %s102
      %p114 = scmp.eq.s32.totalorder %s27, 1
      %p115 = por %p113, %p114
      %p117 = scmp.ne.s32.totalorder %s102, %s116
      %p118 = scmp.eq.s32.totalorder %s27, 0
      %p119 = por %p117, %p118
      %s121 = sadd.s32 %s120, 1
      %p124 = scmp.eq.s32.totalorder %s21, 1
      %p125 = scmp.ne.s32.totalorder %s120, %s122
      %p126 = scmp.eq.s32.totalorder %s21, 0
      %p127 = por %p125, %p126
      %p128 = scmp.ne.s32.totalorder %s120, %s122
      %p129 = scmp.eq.s32.totalorder %s26, 1
      %p130 = por %p128, %p129
      %p131 = scmp.ne.s32.totalorder %s122, %s123
      %p132 = scmp.eq.s32.totalorder %s26, 0
      %p133 = por %p131, %p132
      %p134 = scmp.ne.s32.totalorder %s122, %s123
      %p135 = scmp.eq.s32.totalorder %s27, 1
      %p136 = por %p134, %p135
      %p138 = scmp.ne.s32.totalorder %s123, %s137
      %p139 = scmp.eq.s32.totalorder %s27, 0
      %p140 = por %p138, %p139
      %s142 = sadd.s32 %s141, 1
      %p145 = scmp.eq.s32.totalorder %s21, 1
      %p146 = scmp.ne.s32.totalorder %s141, %s143
      %p147 = scmp.eq.s32.totalorder %s21, 0
      %p148 = por %p146, %p147
      %p149 = scmp.ne.s32.totalorder %s141, %s143
      %p150 = scmp.eq.s32.totalorder %s26, 1
      %p151 = por %p149, %p150
      %p152 = scmp.ne.s32.totalorder %s143, %s144
      %p153 = scmp.eq.s32.totalorder %s26, 0
      %p154 = por %p152, %p153
      %p155 = scmp.ne.s32.totalorder %s143, %s144
      %p156 = scmp.eq.s32.totalorder %s27, 1
      %p157 = por %p155, %p156
      %p159 = scmp.ne.s32.totalorder %s144, %s158
      %p160 = scmp.eq.s32.totalorder %s27, 0
      %p161 = por %p159, %p160
      %s163 = sadd.s32 %s162, 1
      %p166 = scmp.eq.s32.totalorder %s21, 1
      %p167 = scmp.ne.s32.totalorder %s162, %s164
      %p168 = scmp.eq.s32.totalorder %s21, 0
      %p169 = por %p167, %p168
      %p170 = scmp.ne.s32.totalorder %s162, %s164
      %p171 = scmp.eq.s32.totalorder %s26, 1
      %p172 = por %p170, %p171
      %p173 = scmp.ne.s32.totalorder %s164, %s165
      %p174 = scmp.eq.s32.totalorder %s26, 0
      %p175 = por %p173, %p174
      %p176 = scmp.ne.s32.totalorder %s164, %s165
      %p177 = scmp.eq.s32.totalorder %s27, 1
      %p178 = por %p176, %p177
      %p180 = scmp.ne.s32.totalorder %s165, %s179
      %p181 = scmp.eq.s32.totalorder %s27, 0
      %p182 = por %p180, %p181
      %s184 = sadd.s32 %s183, 1
      %p187 = scmp.eq.s32.totalorder %s21, 1
      %p188 = scmp.ne.s32.totalorder %s183, %s185
      %p189 = scmp.eq.s32.totalorder %s21, 0
      %p190 = por %p188, %p189
      %p191 = scmp.ne.s32.totalorder %s183, %s185
      %p192 = scmp.eq.s32.totalorder %s26, 1
      %p193 = por %p191, %p192
      %p194 = scmp.ne.s32.totalorder %s185, %s186
      %p195 = scmp.eq.s32.totalorder %s26, 0
      %p196 = por %p194, %p195
      %p197 = scmp.ne.s32.totalorder %s185, %s186
      %p198 = scmp.eq.s32.totalorder %s27, 1
      %p199 = por %p197, %p198
      %p201 = scmp.ne.s32.totalorder %s186, %s200
      %p202 = scmp.eq.s32.totalorder %s27, 0
      %p203 = por %p201, %p202
      %s204 = ssub.s32 %s28, %s47
      %s205 = ssub.s32 %s29, %s43
      %s206 = sor.u32 %s204, %s205
      %p207 = scmp.eq.s32.totalorder %s206, 0
      %s209 = sadd.s32 %s208, 1
      %s210 = scalar_select %p207, %s208, %s209
      %p213 = pneg %p207
      %p214 = scmp.eq.s32.totalorder %s21, 1
      %p215 = por %p213, %p214
      %p216 = scmp.ne.s32.totalorder %s208, %s211
      %p217 = scmp.eq.s32.totalorder %s21, 0
      %p218 = por %p216, %p217
      %p219 = scmp.ne.s32.totalorder %s208, %s211
      %p220 = scmp.eq.s32.totalorder %s26, 1
      %p221 = por %p219, %p220
      %p222 = scmp.ne.s32.totalorder %s211, %s212
      %p223 = scmp.eq.s32.totalorder %s26, 0
      %p224 = por %p222, %p223
      %p225 = scmp.ne.s32.totalorder %s211, %s212
      %p226 = scmp.eq.s32.totalorder %s27, 1
      %p227 = por %p225, %p226
      %p229 = scmp.ne.s32.totalorder %s212, %s228
      %p230 = scmp.eq.s32.totalorder %s27, 0
      %p231 = por %p229, %p230
      %p232 = scmp.le.s32.totalorder 1, %s21
      %p233 = scmp.lt.s32.totalorder %s21, 3
      %p234 = pnand %p232, %p233
      %p235 = pneg %p234
      // Predicated region
      $region9: #{tpu_custom_call.1} parent=5 // pred_check
        _
      $region10: #{tpu_custom_call.1} parent=5 // pred_check_branch
        %237 = sbr.rel (%p234) target = $region12
      $region11: #{tpu_custom_call.1} parent=5 // pred_region
        %s238 = ssub.s32 %s21, 1
        // Predicated region
        $region13: #{tpu_custom_call.1} parent=11 // pred_check
          %p239 = pneg %p91
        $region14: #{tpu_custom_call.1} parent=11 // pred_check_branch
          %241 = sbr.rel (%p239) target = $region16
        $region15: #{tpu_custom_call.1} parent=11 // pred_region
          %s243 = ssub.s32 256, 256
          %244 = vsyncadd [#allocation6], %s243
          %s245 = sshll.u32 [#allocation5], 4
          %s246 = int_to_ptr.vmem [resolvable:$true] %s245
          %251 = dma.hbm_to_vmem [thread:$0]  %s1, 256, %s246, [#allocation6], 128, 128, 8
        $region16: #{tpu_custom_call.1} parent=11 // pred_fallthru
          _
        // Predicated region
        $region17: #{tpu_custom_call.1} parent=11 // pred_check
          %p252 = pneg %p112
        $region18: #{tpu_custom_call.1} parent=11 // pred_check_branch
          %254 = sbr.rel (%p252) target = $region20
        $region19: #{tpu_custom_call.1} parent=11 // pred_region
          _
        $region20: #{tpu_custom_call.1} parent=11 // pred_fallthru
          _
        // Predicated region
        $region21: #{tpu_custom_call.1} parent=11 // pred_check
          %p255 = pneg %p133
        $region22: #{tpu_custom_call.1} parent=11 // pred_check_branch
          %257 = sbr.rel (%p255) target = $region24
        $region23: #{tpu_custom_call.1} parent=11 // pred_region
          _
        $region24: #{tpu_custom_call.1} parent=11 // pred_fallthru
          _
        // Predicated region
        $region25: #{tpu_custom_call.1} parent=11 // pred_check
          %p258 = pneg %p154
        $region26: #{tpu_custom_call.1} parent=11 // pred_check_branch
          %260 = sbr.rel (%p258) target = $region28
        $region27: #{tpu_custom_call.1} parent=11 // pred_region
          %s262 = ssub.s32 64, 64
          %263 = vsyncadd [#allocation6], %s262
          %s265 = sshll.u32 [#allocation7], 4
          %s266 = int_to_ptr.vmem [resolvable:$true] %s265
          %268 = dma.hbm_to_vmem [thread:$0]  %s4, 64, %s266, [#allocation6]
        $region28: #{tpu_custom_call.1} parent=11 // pred_fallthru
          _
        // Predicated region
        $region29: #{tpu_custom_call.1} parent=11 // pred_check
          %p269 = pneg %p175
        $region30: #{tpu_custom_call.1} parent=11 // pred_check_branch
          %271 = sbr.rel (%p269) target = $region32
        $region31: #{tpu_custom_call.1} parent=11 // pred_region
          _
        $region32: #{tpu_custom_call.1} parent=11 // pred_fallthru
          _
        // Predicated region
        $region33: #{tpu_custom_call.1} parent=11 // pred_check
          %p272 = pneg %p196
        $region34: #{tpu_custom_call.1} parent=11 // pred_check_branch
          %274 = sbr.rel (%p272) target = $region36
        $region35: #{tpu_custom_call.1} parent=11 // pred_region
          %s276 = ssub.s32 128, 128
          %277 = vsyncadd [#allocation9], %s276
          %s279 = sshll.u32 [#allocation8], 4
          %s280 = int_to_ptr.vmem [resolvable:$true] %s279
          %282 = dma.hbm_to_vmem [thread:$0]  %s6, 128, %s280, [#allocation9]
        $region36: #{tpu_custom_call.1} parent=11 // pred_fallthru
          _
      $region12: #{tpu_custom_call.1} parent=5 // pred_fallthru
        _
      %p283 = scmp.lt.s32.totalorder %s21, 2
      // Predicated region
      $region37: #{tpu_custom_call.1} parent=5 // pred_check
        %p284 = pneg %p283
      $region38: #{tpu_custom_call.1} parent=5 // pred_check_branch
        %286 = sbr.rel (%p284) target = $region40
      $region39: #{tpu_custom_call.1} parent=5 // pred_region
        // Predicated region
        $region41: #{tpu_custom_call.1} parent=39 // pred_check
          %p287 = pneg %p64
        $region42: #{tpu_custom_call.1} parent=39 // pred_check_branch
          %289 = sbr.rel (%p287) target = $region44
        $region43: #{tpu_custom_call.1} parent=39 // pred_region
          %s290 = sand.u32 %s54, 1
          %s291 = scalar_lea.sflag [#allocation3], %s290
          %s292 = sand.u32 %s54, 1
          %s293 = smul.addr %s292, 16
          %s294 = scalar_lea.vmem [#allocation2], %s293
          %s295 = sadd.s32 %s29, %s30
          %s296 = smul.u32 2, %s295
          %s298 = ssub.s32 256, 256
          %299 = vsyncadd %s291, %s298
          %s300 = smul.addr %s28, 4
          %s301 = sadd.s32 %s296, %s300
          %s302 = smul.addr %s301, 64
          %s303 = scalar_lea.hbm %s0, %s302
          %s304 = sshll.u32 %s294, 4
          %s305 = int_to_ptr.vmem [resolvable:$true] %s304
          %310 = dma.hbm_to_vmem [thread:$0]  %s303, 256, %s305, %s291, 128, 128, 8
        $region44: #{tpu_custom_call.1} parent=39 // pred_fallthru
          _
      $region40: #{tpu_custom_call.1} parent=5 // pred_fallthru
        _
      %p311 = scmp.le.s32.totalorder 1, %s21
      %p312 = scmp.lt.s32.totalorder %s21, 3
      %p313 = pnand %p311, %p312
      %p314 = pneg %p313
      // Predicated region
      $region45: #{tpu_custom_call.1} parent=5 // pred_check
        _
      $region46: #{tpu_custom_call.1} parent=5 // pred_check_branch
        %316 = sbr.rel (%p313) target = $region48
      $region47: #{tpu_custom_call.1} parent=5 // pred_region
        %s317 = ssub.s32 %s21, 1
        %s318 = sand.u32 %s57, 1
        %s319 = scalar_lea.sflag [#allocation3], %s318
        %s320 = sand.u32 %s57, 1
        %s321 = smul.addr %s320, 16
        %s322 = scalar_lea.vmem [#allocation2], %s321
        // Predicated region
        $region49: #{tpu_custom_call.1} parent=47 // pred_check
          %p323 = pneg %p70
        $region50: #{tpu_custom_call.1} parent=47 // pred_check_branch
          %325 = sbr.rel (%p323) target = $region52
        $region51: #{tpu_custom_call.1} parent=47 // pred_region
          %326 = dma.done %s319, 256
        $region52: #{tpu_custom_call.1} parent=47 // pred_fallthru
          _
        // Predicated region
        $region53: #{tpu_custom_call.1} parent=47 // pred_check
          %p327 = pneg %p91
        $region54: #{tpu_custom_call.1} parent=47 // pred_check_branch
          %329 = sbr.rel (%p327) target = $region56
        $region55: #{tpu_custom_call.1} parent=47 // pred_region
          %330 = dma.done [#allocation6], 256
        $region56: #{tpu_custom_call.1} parent=47 // pred_fallthru
          _
        // Predicated region
        $region57: #{tpu_custom_call.1} parent=47 // pred_check
          %p331 = pneg %p154
        $region58: #{tpu_custom_call.1} parent=47 // pred_check_branch
          %333 = sbr.rel (%p331) target = $region60
        $region59: #{tpu_custom_call.1} parent=47 // pred_region
          %334 = dma.done [#allocation6], 64
        $region60: #{tpu_custom_call.1} parent=47 // pred_fallthru
          _
        // Predicated region
        $region61: #{tpu_custom_call.1} parent=47 // pred_check
          %p335 = pneg %p196
        $region62: #{tpu_custom_call.1} parent=47 // pred_check_branch
          %337 = sbr.rel (%p335) target = $region64
        $region63: #{tpu_custom_call.1} parent=47 // pred_region
          %338 = dma.done [#allocation9], 128
        $region64: #{tpu_custom_call.1} parent=47 // pred_fallthru
          _
        %s339 = sand.u32 %s57, 1
        %s340 = scalar_lea.sflag [#allocation3], %s339
        %s341 = sand.u32 %s57, 1
        %s342 = smul.addr %s341, 16
        %s343 = scalar_lea.vmem [#allocation2], %s342
        %p344 = pneg %p70
        %p345 = pneg %p67
        %p346 = pneg %p91
        %p347 = pneg %p88
        %p348 = pneg %p112
        %p349 = pneg %p109
        %p350 = pneg %p133
        %p351 = pneg %p130
        %p352 = pneg %p154
        %p353 = pneg %p151
        %p354 = pneg %p175
        %p355 = pneg %p172
        %p356 = pneg %p196
        %p357 = pneg %p193
        %p358 = pneg %p224
        %p359 = pneg %p221
        %s360 = sand.u32 %s211, 1
        %s361 = scalar_lea.sflag [#allocation4], %s360
        %s362 = sand.u32 %s211, 1
        %s363 = smul.addr %s362, 40
        %s364 = scalar_lea.vmem [#allocation10], %s363
        %s365 = sadd.s32 %s32, %s33
        %s366 = smul.u32 2, %s365
        %p367 = scmp.eq.s32.totalorder %s33, 0
        // Predicated region
        $region65: #{tpu_custom_call.1} parent=47 // pred_check
          %p368 = pneg %p367
        $region66: #{tpu_custom_call.1} parent=47 // pred_check_branch
          %370 = sbr.rel (%p368) target = $region68
        $region67: #{tpu_custom_call.1} parent=47 // pred_region
          %371 = vst [vmem:[%s364] sm:$0xff] 0.0
          %372 = vst [vmem:[%s364 + $0x8] sm:$0xff] 0.0
          %373 = vst [vmem:[%s364 + $0x10] sm:$0xff] 0.0
          %374 = vst [vmem:[%s364 + $0x18] sm:$0xff] 0.0
          %375 = vst [vmem:[%s364 + $0x20] sm:$0xff] 0.0
        $region68: #{tpu_custom_call.1} parent=47 // pred_fallthru
          _
        %v376 = vld [vmem:[%s322] sm:$0xff]
        %v377 = vld [vmem:[%s322 + $0x8] sm:$0xff]
        %v378 = vunpack.c.l.bf16 %v376
        %v379 = vunpack.c.h.bf16 %v376
        %v380 = vunpack.c.l.bf16 %v377
        %v381 = vunpack.c.h.bf16 %v377
        %v382 = vld [vmem:[#allocation5] sm:$0xff]
        %v383 = vld [vmem:[#allocation5 + $0x8] sm:$0xf]
        %vm384 = vcmask 130048
        %v386 = vsel %vm384, %v382, 0
        %v389 = vsel %vm384, %v383, 0
        %391 = vmatprep.subr.mxu0 0.0
        %392 = vmatpush1.msra.mxu0 0.0
        %393 = vmatprep.subr.mxu0 0.0
        %394 = vmatpush1.msra.mxu0 0.0
        %395 = vmatprep.subr.mxu0 0.0
        %396 = vmatpush1.msra.mxu0 0.0
        %397 = vmatprep.subr.mxu0 0.0
        %398 = vmatpush1.msra.mxu0 0.0
        %399 = vmatprep.subr.mxu0 0.0
        %400 = vmatpush1.msra.mxu0 0.0
        %401 = vmatprep.subr.mxu0 0.0
        %402 = vmatpush1.msra.mxu0 0.0
        %403 = vmatprep.subr.mxu0 0.0
        %404 = vmatpush1.msra.mxu0 0.0
        %405 = vmatprep.subr.mxu0 0.0
        %406 = vmatpush1.msra.mxu0 0.0
        %407 = vmatprep.subr.mxu0 0.0
        %408 = vmatpush1.msra.mxu0 0.0
        %409 = vmatprep.subr.mxu0 0.0
        %410 = vmatpush1.msra.mxu0 0.0
        %411 = vmatprep.subr.mxu0 0.0
        %412 = vmatpush1.msra.mxu0 0.0
        %413 = vmatprep.subr.mxu0 0.0
        %414 = vmatpush1.msra.mxu0 0.0
        %415 = vmatprep.subr.mxu0 0.0
        %416 = vmatpush1.msra.mxu0 0.0
        %417 = vmatprep.subr.mxu0 0.0
        %418 = vmatpush1.msra.mxu0 0.0
        %419 = vmatprep.subr.mxu0 %v381
        %420 = vmatpush1.msra.mxu0 %v380
        %421 = vmatprep.subr.mxu0 %v379
        %422 = vmatpush1.msra.mxu0 %v378
        %423 = vmatprep.subr.mxu0 0.0
        %424 = vmatpush2.msra.mxu0 0.0
        %425 = vmatprep.subr.mxu0 0.0
        %426 = vmatpush2.msra.mxu0 0.0
        %427 = vmatprep.subr.mxu0 0.0
        %428 = vmatpush2.msra.mxu0 0.0
        %429 = vmatprep.subr.mxu0 0.0
        %430 = vmatpush2.msra.mxu0 0.0
        %431 = vmatprep.subr.mxu0 0.0
        %432 = vmatpush2.msra.mxu0 0.0
        %433 = vmatprep.subr.mxu0 0.0
        %434 = vmatpush2.msra.mxu0 0.0
        %435 = vmatprep.subr.mxu0 0.0
        %436 = vmatpush2.msra.mxu0 0.0
        %437 = vmatprep.subr.mxu0 0.0
        %438 = vmatpush2.msra.mxu0 0.0
        %439 = vmatprep.subr.mxu0 0.0
        %440 = vmatpush2.msra.mxu0 0.0
        %441 = vmatprep.subr.mxu0 0.0
        %442 = vmatpush2.msra.mxu0 0.0
        %443 = vmatprep.subr.mxu0 0.0
        %444 = vmatpush2.msra.mxu0 0.0
        %445 = vmatprep.subr.mxu0 0.0
        %446 = vmatpush2.msra.mxu0 0.0
        %447 = vmatprep.subr.mxu0 0.0
        %448 = vmatpush2.msra.mxu0 0.0
        %449 = vmatprep.subr.mxu0 0.0
        %450 = vmatpush2.msra.mxu0 0.0
        %451 = vmatprep.subr.mxu0 0.0
        %452 = vmatpush2.msra.mxu0 0.0
        %453 = vmatprep.subr.mxu0 0.0
        %454 = vmatpush2.msra.mxu0 0.0
        %455 = vmatprep.mubr.f32.mxu0 0.0
        %456 = vmatmul.mubr.f32.gmra.mxu0 %v386
        %v457 = vpop.f32.mrf.mxu0
        %v458 = vadd.f32 0.0, %v457
        %v459 = vpop.f32.mrf.mxu0
        %v460 = vadd.f32 0.0, %v459
        %461 = vmatprep.mubr.f32.mxu0 0.0
        %462 = vmatmul.mubr.f32.gmra.mxu0 %v389
        %v463 = vpop.f32.mrf.mxu0
        %v464 = vadd.f32 0.0, %v463
        %v465 = vpop.f32.mrf.mxu0
        %v466 = vadd.f32 0.0, %v465
        %467 = vdwg.mxu0
        %v468 = vmax.f32 %v458, 0.0
        %v469 = vmax.f32 %v460, 0.0
        %v470 = vmax.f32 %v464, 0.0
        %v471 = vmax.f32 %v466, 0.0
        %v472 = vld [vmem:[%s2] sm:$0xff]
        %vm473 = vcmask 97280
        %v475 = vsel %vm473, %v472, 0
        %vm477 = vcmask 1043456
        %v479 = vsel %vm477, %v470, 0
        %v482 = vsel %vm477, %v471, 0
        %484 = vmatprep.subr.mxu0 0.0
        %485 = vmatpush1.msra.mxu0 0.0
        %486 = vmatprep.subr.mxu0 0.0
        %487 = vmatpush1.msra.mxu0 0.0
        %488 = vmatprep.subr.mxu0 0.0
        %489 = vmatpush1.msra.mxu0 0.0
        %490 = vmatprep.subr.mxu0 0.0
        %491 = vmatpush1.msra.mxu0 0.0
        %492 = vmatprep.subr.mxu0 0.0
        %493 = vmatpush1.msra.mxu0 0.0
        %494 = vmatprep.subr.mxu0 0.0
        %495 = vmatpush1.msra.mxu0 0.0
        %496 = vmatprep.subr.mxu0 0.0
        %497 = vmatpush1.msra.mxu0 0.0
        %498 = vmatprep.subr.mxu0 0.0
        %499 = vmatpush1.msra.mxu0 0.0
        %500 = vmatprep.subr.mxu0 0.0
        %501 = vmatpush1.msra.mxu0 0.0
        %502 = vmatprep.subr.mxu0 0.0
        %503 = vmatpush1.msra.mxu0 0.0
        %504 = vmatprep.subr.mxu0 0.0
        %505 = vmatpush1.msra.mxu0 0.0
        %506 = vmatprep.subr.mxu0 0.0
        %507 = vmatpush1.msra.mxu0 0.0
        %508 = vmatprep.subr.mxu0 0.0
        %509 = vmatpush1.msra.mxu0 0.0
        %510 = vmatprep.subr.mxu0 0.0
        %511 = vmatpush1.msra.mxu0 0.0
        %512 = vmatprep.subr.mxu0 %v482
        %513 = vmatpush1.msra.mxu0 %v479
        %514 = vmatprep.subr.mxu0 %v469
        %515 = vmatpush1.msra.mxu0 %v468
        %516 = vmatprep.subr.mxu0 0.0
        %517 = vmatpush2.msra.mxu0 0.0
        %518 = vmatprep.subr.mxu0 0.0
        %519 = vmatpush2.msra.mxu0 0.0
        %520 = vmatprep.subr.mxu0 0.0
        %521 = vmatpush2.msra.mxu0 0.0
        %522 = vmatprep.subr.mxu0 0.0
        %523 = vmatpush2.msra.mxu0 0.0
        %524 = vmatprep.subr.mxu0 0.0
        %525 = vmatpush2.msra.mxu0 0.0
        %526 = vmatprep.subr.mxu0 0.0
        %527 = vmatpush2.msra.mxu0 0.0
        %528 = vmatprep.subr.mxu0 0.0
        %529 = vmatpush2.msra.mxu0 0.0
        %530 = vmatprep.subr.mxu0 0.0
        %531 = vmatpush2.msra.mxu0 0.0
        %532 = vmatprep.subr.mxu0 0.0
        %533 = vmatpush2.msra.mxu0 0.0
        %534 = vmatprep.subr.mxu0 0.0
        %535 = vmatpush2.msra.mxu0 0.0
        %536 = vmatprep.subr.mxu0 0.0
        %537 = vmatpush2.msra.mxu0 0.0
        %538 = vmatprep.subr.mxu0 0.0
        %539 = vmatpush2.msra.mxu0 0.0
        %540 = vmatprep.subr.mxu0 0.0
        %541 = vmatpush2.msra.mxu0 0.0
        %542 = vmatprep.subr.mxu0 0.0
        %543 = vmatpush2.msra.mxu0 0.0
        %544 = vmatprep.subr.mxu0 0.0
        %545 = vmatpush2.msra.mxu0 0.0
        %546 = vmatprep.subr.mxu0 0.0
        %547 = vmatpush2.msra.mxu0 0.0
        %548 = vmatprep.mubr.f32.mxu0 0.0
        %549 = vmatmul.mubr.f32.gmra.mxu0 %v475
        %v550 = vpop.f32.mrf.mxu0
        %v551 = vadd.f32 0.0, %v550
        %v552 = vpop.f32.mrf.mxu0
        %v553 = vadd.f32 0.0, %v552
        %554 = vdwg.mxu0
        %v555 = vmax.f32 %v551, 0.0
        %v556 = vmax.f32 %v553, 0.0
        %v557 = vld [vmem:[%s3] sm:$0x3f]
        %vm558 = vcmask 64512
        %v560 = vsel %vm558, %v557, 0
        %562 = vmatprep.subr.mxu0 0.0
        %563 = vmatpush1.msra.mxu0 0.0
        %564 = vmatprep.subr.mxu0 0.0
        %565 = vmatpush1.msra.mxu0 0.0
        %566 = vmatprep.subr.mxu0 0.0
        %567 = vmatpush1.msra.mxu0 0.0
        %568 = vmatprep.subr.mxu0 0.0
        %569 = vmatpush1.msra.mxu0 0.0
        %570 = vmatprep.subr.mxu0 0.0
        %571 = vmatpush1.msra.mxu0 0.0
        %572 = vmatprep.subr.mxu0 0.0
        %573 = vmatpush1.msra.mxu0 0.0
        %574 = vmatprep.subr.mxu0 0.0
        %575 = vmatpush1.msra.mxu0 0.0
        %576 = vmatprep.subr.mxu0 0.0
        %577 = vmatpush1.msra.mxu0 0.0
        %578 = vmatprep.subr.mxu0 0.0
        %579 = vmatpush1.msra.mxu0 0.0
        %580 = vmatprep.subr.mxu0 0.0
        %581 = vmatpush1.msra.mxu0 0.0
        %582 = vmatprep.subr.mxu0 0.0
        %583 = vmatpush1.msra.mxu0 0.0
        %584 = vmatprep.subr.mxu0 0.0
        %585 = vmatpush1.msra.mxu0 0.0
        %586 = vmatprep.subr.mxu0 0.0
        %587 = vmatpush1.msra.mxu0 0.0
        %588 = vmatprep.subr.mxu0 0.0
        %589 = vmatpush1.msra.mxu0 0.0
        %590 = vmatprep.subr.mxu0 0.0
        %591 = vmatpush1.msra.mxu0 0.0
        %592 = vmatprep.subr.mxu0 %v556
        %593 = vmatpush1.msra.mxu0 %v555
        %594 = vmatprep.subr.mxu0 0.0
        %595 = vmatpush2.msra.mxu0 0.0
        %596 = vmatprep.subr.mxu0 0.0
        %597 = vmatpush2.msra.mxu0 0.0
        %598 = vmatprep.subr.mxu0 0.0
        %599 = vmatpush2.msra.mxu0 0.0
        %600 = vmatprep.subr.mxu0 0.0
        %601 = vmatpush2.msra.mxu0 0.0
        %602 = vmatprep.subr.mxu0 0.0
        %603 = vmatpush2.msra.mxu0 0.0
        %604 = vmatprep.subr.mxu0 0.0
        %605 = vmatpush2.msra.mxu0 0.0
        %606 = vmatprep.subr.mxu0 0.0
        %607 = vmatpush2.msra.mxu0 0.0
        %608 = vmatprep.subr.mxu0 0.0
        %609 = vmatpush2.msra.mxu0 0.0
        %610 = vmatprep.subr.mxu0 0.0
        %611 = vmatpush2.msra.mxu0 0.0
        %612 = vmatprep.subr.mxu0 0.0
        %613 = vmatpush2.msra.mxu0 0.0
        %614 = vmatprep.subr.mxu0 0.0
        %615 = vmatpush2.msra.mxu0 0.0
        %616 = vmatprep.subr.mxu0 0.0
        %617 = vmatpush2.msra.mxu0 0.0
        %618 = vmatprep.subr.mxu0 0.0
        %619 = vmatpush2.msra.mxu0 0.0
        %620 = vmatprep.subr.mxu0 0.0
        %621 = vmatpush2.msra.mxu0 0.0
        %622 = vmatprep.subr.mxu0 0.0
        %623 = vmatpush2.msra.mxu0 0.0
        %624 = vmatprep.subr.mxu0 0.0
        %625 = vmatpush2.msra.mxu0 0.0
        %626 = vmatprep.mubr.f32.mxu0 0.0
        %627 = vmatmul.mubr.f32.gmra.mxu0 %v560
        %v628 = vpop.f32.mrf.mxu0
        %v629 = vadd.f32 0.0, %v628
        %v630 = vpop.f32.mrf.mxu0
        %v631 = vadd.f32 0.0, %v630
        %632 = vdwg.mxu0
        %v633 = vmax.f32 %v629, 0.0
        %v634 = vmax.f32 %v631, 0.0
        %v635 = vld [vmem:[#allocation7] sm:$0xf]
        %vm636 = vcmask 48128
        %v638 = vsel %vm636, %v635, 0
        %vm640 = vcmask 1045504
        %v642 = vsel %vm640, %v633, 0
        %v645 = vsel %vm640, %v634, 0
        %647 = vmatprep.subr.mxu0 0.0
        %648 = vmatpush1.msra.mxu0 0.0
        %649 = vmatprep.subr.mxu0 0.0
        %650 = vmatpush1.msra.mxu0 0.0
        %651 = vmatprep.subr.mxu0 0.0
        %652 = vmatpush1.msra.mxu0 0.0
        %653 = vmatprep.subr.mxu0 0.0
        %654 = vmatpush1.msra.mxu0 0.0
        %655 = vmatprep.subr.mxu0 0.0
        %656 = vmatpush1.msra.mxu0 0.0
        %657 = vmatprep.subr.mxu0 0.0
        %658 = vmatpush1.msra.mxu0 0.0
        %659 = vmatprep.subr.mxu0 0.0
        %660 = vmatpush1.msra.mxu0 0.0
        %661 = vmatprep.subr.mxu0 0.0
        %662 = vmatpush1.msra.mxu0 0.0
        %663 = vmatprep.subr.mxu0 0.0
        %664 = vmatpush1.msra.mxu0 0.0
        %665 = vmatprep.subr.mxu0 0.0
        %666 = vmatpush1.msra.mxu0 0.0
        %667 = vmatprep.subr.mxu0 0.0
        %668 = vmatpush1.msra.mxu0 0.0
        %669 = vmatprep.subr.mxu0 0.0
        %670 = vmatpush1.msra.mxu0 0.0
        %671 = vmatprep.subr.mxu0 0.0
        %672 = vmatpush1.msra.mxu0 0.0
        %673 = vmatprep.subr.mxu0 0.0
        %674 = vmatpush1.msra.mxu0 0.0
        %675 = vmatprep.subr.mxu0 0.0
        %676 = vmatpush1.msra.mxu0 0.0
        %677 = vmatprep.subr.mxu0 %v645
        %678 = vmatpush1.msra.mxu0 %v642
        %679 = vmatprep.subr.mxu0 0.0
        %680 = vmatpush2.msra.mxu0 0.0
        %681 = vmatprep.subr.mxu0 0.0
        %682 = vmatpush2.msra.mxu0 0.0
        %683 = vmatprep.subr.mxu0 0.0
        %684 = vmatpush2.msra.mxu0 0.0
        %685 = vmatprep.subr.mxu0 0.0
        %686 = vmatpush2.msra.mxu0 0.0
        %687 = vmatprep.subr.mxu0 0.0
        %688 = vmatpush2.msra.mxu0 0.0
        %689 = vmatprep.subr.mxu0 0.0
        %690 = vmatpush2.msra.mxu0 0.0
        %691 = vmatprep.subr.mxu0 0.0
        %692 = vmatpush2.msra.mxu0 0.0
        %693 = vmatprep.subr.mxu0 0.0
        %694 = vmatpush2.msra.mxu0 0.0
        %695 = vmatprep.subr.mxu0 0.0
        %696 = vmatpush2.msra.mxu0 0.0
        %697 = vmatprep.subr.mxu0 0.0
        %698 = vmatpush2.msra.mxu0 0.0
        %699 = vmatprep.subr.mxu0 0.0
        %700 = vmatpush2.msra.mxu0 0.0
        %701 = vmatprep.subr.mxu0 0.0
        %702 = vmatpush2.msra.mxu0 0.0
        %703 = vmatprep.subr.mxu0 0.0
        %704 = vmatpush2.msra.mxu0 0.0
        %705 = vmatprep.subr.mxu0 0.0
        %706 = vmatpush2.msra.mxu0 0.0
        %707 = vmatprep.subr.mxu0 0.0
        %708 = vmatpush2.msra.mxu0 0.0
        %709 = vmatprep.subr.mxu0 0.0
        %710 = vmatpush2.msra.mxu0 0.0
        %711 = vmatprep.mubr.f32.mxu0 0.0
        %712 = vmatmul.mubr.f32.gmra.mxu0 %v638
        %v713 = vpop.f32.mrf.mxu0
        %v714 = vadd.f32 0.0, %v713
        %v715 = vpop.f32.mrf.mxu0
        %v716 = vadd.f32 0.0, %v715
        %717 = vdwg.mxu0
        %v718 = vmax.f32 %v714, 0.0
        %v719 = vmax.f32 %v716, 0.0
        %v720 = vld [vmem:[%s5] sm:$0x3f]
        %vm721 = vcmask 31744
        %v723 = vsel %vm721, %v720, 0
        %v726 = vsel %vm477, %v718, 0
        %v729 = vsel %vm477, %v719, 0
        %731 = vmatprep.subr.mxu0 0.0
        %732 = vmatpush1.msra.mxu0 0.0
        %733 = vmatprep.subr.mxu0 0.0
        %734 = vmatpush1.msra.mxu0 0.0
        %735 = vmatprep.subr.mxu0 0.0
        %736 = vmatpush1.msra.mxu0 0.0
        %737 = vmatprep.subr.mxu0 0.0
        %738 = vmatpush1.msra.mxu0 0.0
        %739 = vmatprep.subr.mxu0 0.0
        %740 = vmatpush1.msra.mxu0 0.0
        %741 = vmatprep.subr.mxu0 0.0
        %742 = vmatpush1.msra.mxu0 0.0
        %743 = vmatprep.subr.mxu0 0.0
        %744 = vmatpush1.msra.mxu0 0.0
        %745 = vmatprep.subr.mxu0 0.0
        %746 = vmatpush1.msra.mxu0 0.0
        %747 = vmatprep.subr.mxu0 0.0
        %748 = vmatpush1.msra.mxu0 0.0
        %749 = vmatprep.subr.mxu0 0.0
        %750 = vmatpush1.msra.mxu0 0.0
        %751 = vmatprep.subr.mxu0 0.0
        %752 = vmatpush1.msra.mxu0 0.0
        %753 = vmatprep.subr.mxu0 0.0
        %754 = vmatpush1.msra.mxu0 0.0
        %755 = vmatprep.subr.mxu0 0.0
        %756 = vmatpush1.msra.mxu0 0.0
        %757 = vmatprep.subr.mxu0 0.0
        %758 = vmatpush1.msra.mxu0 0.0
        %759 = vmatprep.subr.mxu0 0.0
        %760 = vmatpush1.msra.mxu0 0.0
        %761 = vmatprep.subr.mxu0 %v729
        %762 = vmatpush1.msra.mxu0 %v726
        %763 = vmatprep.subr.mxu0 0.0
        %764 = vmatpush2.msra.mxu0 0.0
        %765 = vmatprep.subr.mxu0 0.0
        %766 = vmatpush2.msra.mxu0 0.0
        %767 = vmatprep.subr.mxu0 0.0
        %768 = vmatpush2.msra.mxu0 0.0
        %769 = vmatprep.subr.mxu0 0.0
        %770 = vmatpush2.msra.mxu0 0.0
        %771 = vmatprep.subr.mxu0 0.0
        %772 = vmatpush2.msra.mxu0 0.0
        %773 = vmatprep.subr.mxu0 0.0
        %774 = vmatpush2.msra.mxu0 0.0
        %775 = vmatprep.subr.mxu0 0.0
        %776 = vmatpush2.msra.mxu0 0.0
        %777 = vmatprep.subr.mxu0 0.0
        %778 = vmatpush2.msra.mxu0 0.0
        %779 = vmatprep.subr.mxu0 0.0
        %780 = vmatpush2.msra.mxu0 0.0
        %781 = vmatprep.subr.mxu0 0.0
        %782 = vmatpush2.msra.mxu0 0.0
        %783 = vmatprep.subr.mxu0 0.0
        %784 = vmatpush2.msra.mxu0 0.0
        %785 = vmatprep.subr.mxu0 0.0
        %786 = vmatpush2.msra.mxu0 0.0
        %787 = vmatprep.subr.mxu0 0.0
        %788 = vmatpush2.msra.mxu0 0.0
        %789 = vmatprep.subr.mxu0 0.0
        %790 = vmatpush2.msra.mxu0 0.0
        %791 = vmatprep.subr.mxu0 0.0
        %792 = vmatpush2.msra.mxu0 0.0
        %793 = vmatprep.subr.mxu0 0.0
        %794 = vmatpush2.msra.mxu0 0.0
        %795 = vmatprep.mubr.f32.mxu0 0.0
        %796 = vmatmul.mubr.f32.gmra.mxu0 %v723
        %v797 = vpop.f32.mrf.mxu0
        %v798 = vadd.f32 0.0, %v797
        %v799 = vpop.f32.mrf.mxu0
        %v800 = vadd.f32 0.0, %v799
        %801 = vdwg.mxu0
        %v802 = vmax.f32 %v798, 0.0
        %v803 = vmax.f32 %v800, 0.0
        %v804 = vld [vmem:[#allocation8] sm:$0xff]
        %v806 = vsel %vm636, %v804, 0
        %v809 = vsel %vm640, %v802, 0
        %v812 = vsel %vm640, %v803, 0
        %814 = vmatprep.subr.mxu0 0.0
        %815 = vmatpush1.msra.mxu0 0.0
        %816 = vmatprep.subr.mxu0 0.0
        %817 = vmatpush1.msra.mxu0 0.0
        %818 = vmatprep.subr.mxu0 0.0
        %819 = vmatpush1.msra.mxu0 0.0
        %820 = vmatprep.subr.mxu0 0.0
        %821 = vmatpush1.msra.mxu0 0.0
        %822 = vmatprep.subr.mxu0 0.0
        %823 = vmatpush1.msra.mxu0 0.0
        %824 = vmatprep.subr.mxu0 0.0
        %825 = vmatpush1.msra.mxu0 0.0
        %826 = vmatprep.subr.mxu0 0.0
        %827 = vmatpush1.msra.mxu0 0.0
        %828 = vmatprep.subr.mxu0 0.0
        %829 = vmatpush1.msra.mxu0 0.0
        %830 = vmatprep.subr.mxu0 0.0
        %831 = vmatpush1.msra.mxu0 0.0
        %832 = vmatprep.subr.mxu0 0.0
        %833 = vmatpush1.msra.mxu0 0.0
        %834 = vmatprep.subr.mxu0 0.0
        %835 = vmatpush1.msra.mxu0 0.0
        %836 = vmatprep.subr.mxu0 0.0
        %837 = vmatpush1.msra.mxu0 0.0
        %838 = vmatprep.subr.mxu0 0.0
        %839 = vmatpush1.msra.mxu0 0.0
        %840 = vmatprep.subr.mxu0 0.0
        %841 = vmatpush1.msra.mxu0 0.0
        %842 = vmatprep.subr.mxu0 0.0
        %843 = vmatpush1.msra.mxu0 0.0
        %844 = vmatprep.subr.mxu0 %v812
        %845 = vmatpush1.msra.mxu0 %v809
        %846 = vmatprep.subr.mxu0 0.0
        %847 = vmatpush2.msra.mxu0 0.0
        %848 = vmatprep.subr.mxu0 0.0
        %849 = vmatpush2.msra.mxu0 0.0
        %850 = vmatprep.subr.mxu0 0.0
        %851 = vmatpush2.msra.mxu0 0.0
        %852 = vmatprep.subr.mxu0 0.0
        %853 = vmatpush2.msra.mxu0 0.0
        %854 = vmatprep.subr.mxu0 0.0
        %855 = vmatpush2.msra.mxu0 0.0
        %856 = vmatprep.subr.mxu0 0.0
        %857 = vmatpush2.msra.mxu0 0.0
        %858 = vmatprep.subr.mxu0 0.0
        %859 = vmatpush2.msra.mxu0 0.0
        %860 = vmatprep.subr.mxu0 0.0
        %861 = vmatpush2.msra.mxu0 0.0
        %862 = vmatprep.subr.mxu0 0.0
        %863 = vmatpush2.msra.mxu0 0.0
        %864 = vmatprep.subr.mxu0 0.0
        %865 = vmatpush2.msra.mxu0 0.0
        %866 = vmatprep.subr.mxu0 0.0
        %867 = vmatpush2.msra.mxu0 0.0
        %868 = vmatprep.subr.mxu0 0.0
        %869 = vmatpush2.msra.mxu0 0.0
        %870 = vmatprep.subr.mxu0 0.0
        %871 = vmatpush2.msra.mxu0 0.0
        %872 = vmatprep.subr.mxu0 0.0
        %873 = vmatpush2.msra.mxu0 0.0
        %874 = vmatprep.subr.mxu0 0.0
        %875 = vmatpush2.msra.mxu0 0.0
        %876 = vmatprep.subr.mxu0 0.0
        %877 = vmatpush2.msra.mxu0 0.0
        %878 = vmatprep.mubr.f32.mxu0 0.0
        %879 = vmatmul.mubr.f32.gmra.mxu0 %v806
        %v880 = vpop.f32.mrf.mxu0
        %v881 = vadd.f32 0.0, %v880
        %v882 = vpop.f32.mrf.mxu0
        %v883 = vadd.f32 0.0, %v882
        %884 = vdwg.mxu0
        %v885 = vmax.f32 %v881, 0.0
        %v886 = vmax.f32 %v883, 0.0
        %v887 = vld [vmem:[%s364] sm:$0xff]
        %v888 = vld [vmem:[%s364 + $0x8] sm:$0xff]
        %v889 = vadd.f32 %v378, %v379
        %v890 = vadd.f32 %v380, %v381
        %v891 = vadd.f32 %v887, %v889
        %v892 = vadd.f32 %v888, %v890
        %893 = vst [vmem:[%s364] sm:$0xff] %v891
        %894 = vst [vmem:[%s364 + $0x8] sm:$0xff] %v892
        %v895 = vld [vmem:[%s364 + $0x10] sm:$0xff]
        %v896 = vadd.f32 %v555, %v556
        %v897 = vadd.f32 %v895, %v896
        %898 = vst [vmem:[%s364 + $0x10] sm:$0xff] %v897
        %v899 = vld [vmem:[%s364 + $0x18] sm:$0xf]
        %v900 = vadd.f32 %v718, %v719
        %v901 = vadd.f32 %v899, %v900
        %902 = vst [vmem:[%s364 + $0x18] sm:$0xf] %v901
        %v903 = vld [vmem:[%s364 + $0x20] sm:$0xff]
        %v904 = vadd.f32 %v885, %v886
        %v905 = vadd.f32 %v903, %v904
        %906 = vst [vmem:[%s364 + $0x20] sm:$0xff] %v905
        %s907 = sand.u32 %s211, 1
        %s908 = scalar_lea.sflag [#allocation4], %s907
        %s909 = sand.u32 %s211, 1
        %s910 = smul.addr %s909, 40
        %s911 = scalar_lea.vmem [#allocation10], %s910
        // Predicated region
        $region69: #{tpu_custom_call.1} parent=47 // pred_check
          %p912 = pneg %p221
        $region70: #{tpu_custom_call.1} parent=47 // pred_check_branch
          %914 = sbr.rel (%p912) target = $region72
        $region71: #{tpu_custom_call.1} parent=47 // pred_region
          %s916 = ssub.s32 640, 640
          %917 = vsyncadd %s908, %s916
          %s918 = smul.addr %s32, 5
          %s919 = smul.addr %s31, 5
          %s920 = sadd.s32 %s918, %s919
          %s921 = smul.addr %s920, 128
          %s922 = scalar_lea.hbm %s7, %s921
          %s923 = sshll.u32 %s911, 4
          %s924 = int_to_ptr.vmem [resolvable:$true] %s923
          %929 = dma.vmem_to_hbm [thread:$0]  %s924, 640, %s922, %s908, 128, 128, 8
        $region72: #{tpu_custom_call.1} parent=47 // pred_fallthru
          _
      $region48: #{tpu_custom_call.1} parent=5 // pred_fallthru
        _
      %p930 = scmp.le.s32.totalorder 2, %s21
      // Predicated region
      $region73: #{tpu_custom_call.1} parent=5 // pred_check
        %p931 = pneg %p930
      $region74: #{tpu_custom_call.1} parent=5 // pred_check_branch
        %933 = sbr.rel (%p931) target = $region76
      $region75: #{tpu_custom_call.1} parent=5 // pred_region
        %s934 = ssub.s32 %s21, 2
        // Predicated region
        $region77: #{tpu_custom_call.1} parent=75 // pred_check
          %p935 = pneg %p227
        $region78: #{tpu_custom_call.1} parent=75 // pred_check_branch
          %937 = sbr.rel (%p935) target = $region80
        $region79: #{tpu_custom_call.1} parent=75 // pred_region
          %s938 = sand.u32 %s212, 1
          %s939 = scalar_lea.sflag [#allocation4], %s938
          %s940 = sand.u32 %s212, 1
          %s941 = smul.addr %s940, 40
          %s942 = scalar_lea.vmem [#allocation10], %s941
          %943 = dma.done %s939, 640
        $region80: #{tpu_custom_call.1} parent=75 // pred_fallthru
          _
      $region76: #{tpu_custom_call.1} parent=5 // pred_fallthru
        _
    $region6: #{tpu_custom_call.1} parent=1 // loop_footer
      %s25 = sadd.s32 1, %s21
    $region7: #{tpu_custom_call.1} parent=1 // loop_footer_branch
      %20 = sbr.rel target = $region3
    $region8: #{tpu_custom_call.1} parent=1 // loop_exit
      _
    %944 = vsyncpa [#allocation3], 1
    %s945 = scalar_lea.sflag [#allocation3], 1
    %946 = vsyncpa %s945, 1
    %947 = vsyncpa [#allocation6], 1
    %948 = vsyncpa [#allocation9], 1
    %949 = vsyncpa [#allocation4], 1
    %s950 = scalar_lea.sflag [#allocation4], 1
    %951 = vsyncpa %s950, 1

</llo_original>
